<compile_context>
chip_gen: v6e
topology: v6e:2x2x1
jax: 0.10.0
libtpu: 0.0.40
codegen_flags: <defaults>
</compile_context>

<pallas_src>
import jax
import jax.numpy as jnp
from jax import lax
from jax.experimental import pallas as pl
from jax.experimental.pallas import tpu as pltpu

EPS = 1e-3                            # module's self.eps
LANES = 128                           # TPU lane width
SUB = 8                               # f32 sublane tile
MAX_BLOCK_BYTES = 4 * 1024 * 1024     # per-input, per-buffer VMEM tile
VMEM_LIMIT_BYTES = 32 * 1024 * 1024   # 2 in x 2 buf x 4 MiB + slack; <= physical on all chips


def _make_kernel(steps, num_blocks, block_rows, last_rows):
    """Kernel specialized on static grid geometry.

    grid = (splits, steps); axis 1 is the running-sum ("arbitrary") axis.
      x_ref, y_ref : (block_rows, LANES) input tiles (any float dtype)
      out_ref      : (1, SUB, LANES) f32 partial-sum slab for this split;
                     its block index depends only on the split, so it stays
                     VMEM-resident across axis 1 and doubles as accumulator.
    """

    def kernel(x_ref, y_ref, out_ref):
        c = pl.program_id(0)
        i = pl.program_id(1)
        g = c * steps + i            # global block index

        @pl.when(i == 0)
        def _init():
            out_ref[...] = jnp.zeros_like(out_ref)

        x = x_ref[...].astype(jnp.float32)
        y = y_ref[...].astype(jnp.float32)
        diff = x - y
        err = jnp.sqrt(diff * diff + jnp.float32(EPS * EPS))

        if last_rows < block_rows:
            # Only the final in-bounds block is partial: pay the iota+select
            # masking cost on that single step, plain accumulate elsewhere.
            @pl.when(g < num_blocks - 1)
            def _accum_full():
                out_ref[0] += jnp.sum(err.reshape(-1, SUB, LANES), axis=0)

            @pl.when(g == num_blocks - 1)
            def _accum_masked():
                row = lax.broadcasted_iota(jnp.int32, err.shape, 0)
                e = jnp.where(row < last_rows, err, jnp.float32(0.0))
                out_ref[0] += jnp.sum(e.reshape(-1, SUB, LANES), axis=0)
        else:
            # Skip the (at most one) fully out-of-range duplicate block that
            # a 2-way split of an odd block count produces.
            @pl.when(g < num_blocks)
            def _accum():
                # Sublane-aligned fold onto the (8, 128) accumulator: pure
                # VPU adds, no cross-lane XLU work on the per-step path.
                out_ref[0] += jnp.sum(err.reshape(-1, SUB, LANES), axis=0)

    return kernel


def charbonnier_loss(x, y):
    assert x.shape == y.shape
    n = x.size

    xf = jnp.ravel(x)                 # free reshape (contiguous), no copy
    yf = jnp.ravel(y)

    itemsize = max(xf.dtype.itemsize, yf.dtype.itemsize)
    align = SUB * max(1, 4 // itemsize)   # 8 (f32) / 16 (bf16) / 32 (8-bit)
    max_rows = max(align, (MAX_BLOCK_BYTES // (LANES * itemsize)) // align * align)

    # Pad only to the next 128-lane boundary (and at least `align` rows for
    # tiny inputs).  For typical dense tensors (n % 128 == 0) pad == 0 and no
    # copy of the inputs is ever made; padded zeros each contribute exactly
    # EPS and are corrected analytically below.
    rows = max(pl.cdiv(n, LANES), align)
    pad = rows * LANES - n
    if pad:
        xf = jnp.pad(xf, (0, pad))
        yf = jnp.pad(yf, (0, pad))

    block_rows = min(max_rows, (rows // align) * align)   # aligned, <= rows
    num_blocks = pl.cdiv(rows, block_rows)
    splits = 2 if num_blocks >= 2 else 1   # dual-TC on v7x; harmless on 1-TC
    steps = pl.cdiv(num_blocks, splits)
    last_rows = rows - (num_blocks - 1) * block_rows       # valid rows, last block

    x2 = xf.reshape(rows, LANES)     # free reshape (no copy)
    y2 = yf.reshape(rows, LANES)

    if splits * steps > num_blocks:
        # One extra (fully out-of-range) block from the odd split: clamp its
        # window back in-bounds; its compute is skipped in the kernel.
        def in_map(c, i):
            return (jnp.minimum(c * steps + i, num_blocks - 1), 0)
    else:
        def in_map(c, i):
            return (c * steps + i, 0)

    kernel = _make_kernel(steps, num_blocks, block_rows, last_rows)

    n_kernel = rows * LANES
    cost = pl.CostEstimate(
        flops=3 * n_kernel,
        transcendentals=n_kernel,
        bytes_accessed=2 * n_kernel * itemsize + splits * SUB * LANES * 4,
    )

    partial = pl.pallas_call(
        kernel,
        out_shape=jax.ShapeDtypeStruct((splits, SUB, LANES), jnp.float32),
        grid_spec=pltpu.PrefetchScalarGridSpec(
            num_scalar_prefetch=0,
            grid=(splits, steps),
            in_specs=[
                pl.BlockSpec((block_rows, LANES), in_map),
                pl.BlockSpec((block_rows, LANES), in_map),
            ],
            out_specs=pl.BlockSpec((1, SUB, LANES), lambda c, i: (c, 0, 0)),
        ),
        compiler_params=pltpu.CompilerParams(
            dimension_semantics=("parallel", "arbitrary"),
            vmem_limit_bytes=VMEM_LIMIT_BYTES,
        ),
        cost_estimate=cost,
    )(x2, y2)

    # Single cross-lane reduce over the tiny (splits, 8, 128) slab, then
    # remove the padding contribution (each padded zero adds exactly EPS).
    total = jnp.sum(partial) - jnp.float32(pad) * jnp.float32(EPS)
    return total / jnp.float32(n)


if __name__ == "__main__":
    key = jax.random.PRNGKey(0)
    kx, ky = jax.random.split(key)

    def ref_loss(a, b):
        return jnp.mean(jnp.sqrt((a - b) ** 2 + EPS * EPS))

    # Primary case: NCHW tensor, lane-divisible flat size (no pad, no mask).
    shape = (2, 4, 16, 16)
    X = jax.random.normal(kx, shape, dtype=jnp.float32)
    Y = jax.random.normal(ky, shape, dtype=jnp.float32)
    loss = charbonnier_loss(X, Y)
    jax.block_until_ready(loss)
    assert jnp.allclose(loss, ref_loss(X, Y), rtol=1e-5, atol=1e-6), (loss, ref_loss(X, Y))

    # Exercise the partial-last-block mask + 2-way split (rows=20, block=16).
    X2 = jax.random.normal(kx, (4, 5, 128), dtype=jnp.float32)
    Y2 = jax.random.normal(ky, (4, 5, 128), dtype=jnp.float32)
    loss2 = charbonnier_loss(X2, Y2)
    jax.block_until_ready(loss2)
    assert jnp.allclose(loss2, ref_loss(X2, Y2), rtol=1e-5, atol=1e-6), (loss2, ref_loss(X2, Y2))

    # Exercise the (rare) lane-padding fallback path (n = 1155, pad = 125).
    X3 = jax.random.normal(kx, (3, 5, 7, 11), dtype=jnp.float32)
    Y3 = jax.random.normal(ky, (3, 5, 7, 11), dtype=jnp.float32)
    loss3 = charbonnier_loss(X3, Y3)
    jax.block_until_ready(loss3)
    assert jnp.allclose(loss3, ref_loss(X3, Y3), rtol=1e-5, atol=1e-6), (loss3, ref_loss(X3, Y3))

    print("KERNEL_OK")
</pallas_src>

<mosaic_0001>
module attributes {stable_mosaic.version = 11 : i64} {
  func.func @kernel(%arg0: i32, %arg1: i32, %arg2: memref<16x128xf32, #tpu.memory_space<vmem>>, %arg3: memref<16x128xf32, #tpu.memory_space<vmem>>, %arg4: memref<1x8x128xf32, #tpu.memory_space<vmem>>) attributes {dimension_semantics = [#tpu.dimension_semantics<parallel>, #tpu.dimension_semantics<arbitrary>], iteration_bounds = array<i64: 1, 1>, scalar_prefetch = 0 : i64, scratch_operands = 0 : i64, tpu.core_type = #tpu.core_type<tc>, window_params = [{transform_indices = @transform_0, window_bounds = array<i64: 16, 128>}, {transform_indices = @transform_1, window_bounds = array<i64: 16, 128>}, {transform_indices = @transform_2, window_bounds = array<i64: 1, 8, 128>}]} {
    %c1_i32 = arith.constant 1 : i32
    %0 = arith.muli %arg0, %c1_i32 : i32
    %1 = arith.addi %0, %arg1 : i32
    %c0_i32 = arith.constant 0 : i32
    %2 = arith.cmpi eq, %arg1, %c0_i32 : i32
    %3 = arith.extui %2 : i1 to i32
    %c0_i32_0 = arith.constant 0 : i32
    %4 = arith.cmpi ne, %3, %c0_i32_0 : i32
    scf.if %4 {
      %cst_6 = arith.constant 0.000000e+00 : f32
      %15 = vector.broadcast %cst_6 : f32 to vector<1x8x128xf32>
      %c0_7 = arith.constant 0 : index
      %c0_8 = arith.constant 0 : index
      %c0_9 = arith.constant 0 : index
      %16 = vector.load %arg4[%c0_7, %c0_8, %c0_9] : memref<1x8x128xf32, #tpu.memory_space<vmem>>, vector<1x8x128xf32>
      tpu.vector_store %arg4[%c0_7, %c0_8, %c0_9], %15 {strides = array<i32>} : memref<1x8x128xf32, #tpu.memory_space<vmem>>, vector<1x8x128xf32>,
    } else {
    }
    %c0 = arith.constant 0 : index
    %c0_1 = arith.constant 0 : index
    %5 = vector.load %arg2[%c0, %c0_1] : memref<16x128xf32, #tpu.memory_space<vmem>>, vector<16x128xf32>
    %c0_2 = arith.constant 0 : index
    %c0_3 = arith.constant 0 : index
    %6 = vector.load %arg3[%c0_2, %c0_3] : memref<16x128xf32, #tpu.memory_space<vmem>>, vector<16x128xf32>
    %7 = arith.subf %5, %6 : vector<16x128xf32>
    %8 = arith.mulf %7, %7 : vector<16x128xf32>
    %cst = arith.constant 9.99999997E-7 : f32
    %9 = vector.broadcast %cst : f32 to vector<16x128xf32>
    %10 = arith.addf %8, %9 : vector<16x128xf32>
    %11 = math.sqrt %10 : vector<16x128xf32>
    %c1_i32_4 = arith.constant 1 : i32
    %12 = arith.cmpi slt, %1, %c1_i32_4 : i32
    %13 = arith.extui %12 : i1 to i32
    %c0_i32_5 = arith.constant 0 : i32
    %14 = arith.cmpi ne, %13, %c0_i32_5 : i32
    scf.if %14 {
      %c0_6 = arith.constant 0 : index
      %c0_7 = arith.constant 0 : index
      %c0_8 = arith.constant 0 : index
      %15 = vector.load %arg4[%c0_6, %c0_7, %c0_8] : memref<1x8x128xf32, #tpu.memory_space<vmem>>, vector<1x8x128xf32>
      %16 = vector.shape_cast %15 : vector<1x8x128xf32> to vector<8x128xf32>
      %17 = vector.shape_cast %11 : vector<16x128xf32> to vector<2x8x128xf32>
      %cst_9 = arith.constant dense<0.000000e+00> : vector<8x128xf32>
      %18 = vector.multi_reduction <add>, %17, %cst_9 [0] : vector<2x8x128xf32> to vector<8x128xf32>
      %19 = arith.addf %16, %18 : vector<8x128xf32>
      %c0_10 = arith.constant 0 : index
      %c0_11 = arith.constant 0 : index
      %c0_12 = arith.constant 0 : index
      %20 = vector.load %arg4[%c0_10, %c0_11, %c0_12] : memref<1x8x128xf32, #tpu.memory_space<vmem>>, vector<1x8x128xf32>
      %21 = vector.shape_cast %20 : vector<1x8x128xf32> to vector<8x128xf32>
      %22 = vector.shape_cast %19 : vector<8x128xf32> to vector<1x8x128xf32>
      tpu.vector_store %arg4[%c0_10, %c0_11, %c0_12], %22 {strides = array<i32>} : memref<1x8x128xf32, #tpu.memory_space<vmem>>, vector<1x8x128xf32>,
    } else {
    }
    return
  }
  func.func @transform_0(%arg0: i32, %arg1: i32) -> (i32, i32) {
    %c1_i32 = arith.constant 1 : i32
    %0 = arith.muli %arg0, %c1_i32 : i32
    %1 = arith.addi %0, %arg1 : i32
    %c0_i32 = arith.constant 0 : i32
    %c0_i32_0 = arith.constant 0 : i32
    return %1, %c0_i32 : i32, i32
  }
  func.func @transform_1(%arg0: i32, %arg1: i32) -> (i32, i32) {
    %c1_i32 = arith.constant 1 : i32
    %0 = arith.muli %arg0, %c1_i32 : i32
    %1 = arith.addi %0, %arg1 : i32
    %c0_i32 = arith.constant 0 : i32
    %c0_i32_0 = arith.constant 0 : i32
    return %1, %c0_i32 : i32, i32
  }
  func.func @transform_2(%arg0: i32, %arg1: i32) -> (i32, i32, i32) {
    %c0_i32 = arith.constant 0 : i32
    %c0_i32_0 = arith.constant 0 : i32
    %c0_i32_1 = arith.constant 0 : i32
    return %arg0, %c0_i32, %c0_i32_0 : i32, i32, i32
  }
}

</mosaic_0001>

<llo_original>
// kernel: tpu_custom_call.1
$region0: #{tpu_custom_call.1}
  #allocation0 [shape = 'u32[]', space=smem, size = 0x4, offset = 0x4, fixed_abs, tag = 'smem constant byte address 0x4 - core index']
  #allocation1 [shape = 'u32[144,128]{1,0:T(1,128)}', space=vmem, size = 0x12000, scoped, tag = 'internal scratch']
  %s0 = inlined_call_operand.hbm [shape: f32[16,128], index: 0, kind: input, shape index: {}]
  %s1 = inlined_call_operand.hbm [shape: f32[16,128], index: 1, kind: input, shape index: {}]
  %s2 = inlined_call_operand.hbm [shape: f32[1,8,128], index: 2, kind: output, shape index: {}]
  %s3 = sld [smem:[#allocation0]]
  $region34: #{tpu_custom_call.1} parent=0
    _
  %s5 = ssub.s32 1, %s3
  %s6 = scalar_select 0, %s5, %s3
  $region1: #{tpu_custom_call.1} parent=0
    #allocation2 [shape = 'u8[8192]{0}', space=vmem, size = 0x2000, scoped, tag = 'input window, operand 0, single buffered']
    #allocation3 [shape = 's32[1]{0}', space=sflag, size = 0x4, scoped, tag = 'scoped memory for tpu_custom_call.1']
    #allocation4 [shape = 's32[1]{0}', space=sflag, size = 0x4, scoped, tag = 'scoped memory for tpu_custom_call.1']
    #allocation5 [shape = 'u8[8192]{0}', space=vmem, size = 0x2000, scoped, tag = 'input window, operand 1, single buffered']
    #allocation6 [shape = 's32[1]{0}', space=sflag, size = 0x4, scoped, tag = 'scoped memory for tpu_custom_call.1']
    #allocation7 [shape = 'u8[4096]{0}', space=vmem, size = 0x1000, scoped, tag = 'output window, operand 0, single buffered']
    %7 = vsyncpa [#allocation3], 0
    %8 = vsyncpa [#allocation6], 0
    %9 = vsyncpa [#allocation4], 0
    // Predicated region
    $region2: #{tpu_custom_call.1} parent=1 // pred_check
      _
    $region3: #{tpu_custom_call.1} parent=1 // pred_check_branch
      %11 = sbr.rel (0) target = $region5
    $region4: #{tpu_custom_call.1} parent=1 // pred_region
      %s12 = sadd.s32 0, 0
      %s13 = smul.u32 2, %s12
      %s15 = ssub.s32 256, 256
      %16 = vsyncadd [#allocation3], %s15
      %s17 = smul.addr %s13, 128
      %s18 = scalar_lea.hbm %s0, %s17
      %s19 = sshll.u32 [#allocation2], 4
      %s20 = int_to_ptr.vmem [resolvable:$true] %s19
      %25 = dma.hbm_to_vmem [thread:$0]  %s18, 256, %s20, [#allocation3], 128, 128, 8
    $region5: #{tpu_custom_call.1} parent=1 // pred_fallthru
      _
    // Predicated region
    $region6: #{tpu_custom_call.1} parent=1 // pred_check
      _
    $region7: #{tpu_custom_call.1} parent=1 // pred_check_branch
      %27 = sbr.rel (0) target = $region9
    $region8: #{tpu_custom_call.1} parent=1 // pred_region
      %s28 = sadd.s32 0, 0
      %s29 = smul.u32 2, %s28
      %s31 = ssub.s32 256, 256
      %32 = vsyncadd [#allocation6], %s31
      %s33 = smul.addr %s29, 128
      %s34 = scalar_lea.hbm %s1, %s33
      %s35 = sshll.u32 [#allocation5], 4
      %s36 = int_to_ptr.vmem [resolvable:$true] %s35
      %41 = dma.hbm_to_vmem [thread:$0]  %s34, 256, %s36, [#allocation6], 128, 128, 8
    $region9: #{tpu_custom_call.1} parent=1 // pred_fallthru
      _
    // Predicated region
    $region10: #{tpu_custom_call.1} parent=1 // pred_check
      _
    $region11: #{tpu_custom_call.1} parent=1 // pred_check_branch
      %43 = sbr.rel (0) target = $region13
    $region12: #{tpu_custom_call.1} parent=1 // pred_region
      %44 = dma.done [#allocation3], 256
    $region13: #{tpu_custom_call.1} parent=1 // pred_fallthru
      _
    // Predicated region
    $region14: #{tpu_custom_call.1} parent=1 // pred_check
      _
    $region15: #{tpu_custom_call.1} parent=1 // pred_check_branch
      %46 = sbr.rel (0) target = $region17
    $region16: #{tpu_custom_call.1} parent=1 // pred_region
      %47 = dma.done [#allocation6], 256
    $region17: #{tpu_custom_call.1} parent=1 // pred_fallthru
      _
    %s48 = sadd.s32 0, 0
    %s49 = smul.u32 2, %s48
    %s50 = sadd.s32 0, 0
    %s51 = smul.u32 2, %s50
    %s52 = sadd.s32 0, 0
    %p53 = scmp.eq.s32.totalorder 0, 0
    // Predicated region
    $region18: #{tpu_custom_call.1} parent=1 // pred_check
      %p54 = pneg %p53
    $region19: #{tpu_custom_call.1} parent=1 // pred_check_branch
      %56 = sbr.rel (%p54) target = $region21
    $region20: #{tpu_custom_call.1} parent=1 // pred_region
      %57 = vst [vmem:[#allocation7] sm:$0xff] 0.0
    $region21: #{tpu_custom_call.1} parent=1 // pred_fallthru
      _
    %v58 = vld [vmem:[#allocation2] sm:$0xff]
    %v59 = vld [vmem:[#allocation2 + $0x8] sm:$0xff]
    %v60 = vld [vmem:[#allocation5] sm:$0xff]
    %v61 = vld [vmem:[#allocation5 + $0x8] sm:$0xff]
    %v62 = vsub.f32 %v58, %v60
    %v63 = vsub.f32 %v59, %v61
    %v64 = vmul.f32 %v62, %v62
    %v65 = vmul.f32 %v63, %v63
    %v66 = vadd.f32 %v64, 1e-06
    %v67 = vadd.f32 %v65, 1e-06
    %v68 = vrsqrt.pop %v66
    %v69 = vmul.f32 %v66, %v68
    %vm70 = vcmp.eq.f32.partialorder %v66, inf
    %v71 = vsel %vm70, %v66, %v69
    %vm72 = vcmp.eq.f32.partialorder %v66, 0.0
    %v73 = vand.u32 %v66, 2147483648
    %v74 = vsel %vm72, %v73, %v71
    %v75 = vrsqrt.pop %v67
    %v76 = vmul.f32 %v67, %v75
    %vm77 = vcmp.eq.f32.partialorder %v67, inf
    %v78 = vsel %vm77, %v67, %v76
    %vm79 = vcmp.eq.f32.partialorder %v67, 0.0
    %v80 = vand.u32 %v67, 2147483648
    %v81 = vsel %vm79, %v80, %v78
    %p82 = scmp.lt.s32.totalorder %s52, 1
    // Predicated region
    $region22: #{tpu_custom_call.1} parent=1 // pred_check
      %p83 = pneg %p82
    $region23: #{tpu_custom_call.1} parent=1 // pred_check_branch
      %85 = sbr.rel (%p83) target = $region25
    $region24: #{tpu_custom_call.1} parent=1 // pred_region
      %v86 = vld [vmem:[#allocation7] sm:$0xff]
      %v87 = vadd.f32 %v74, %v81
      %v88 = vadd.f32 %v86, %v87
      %89 = vst [vmem:[#allocation7] sm:$0xff] %v88
    $region25: #{tpu_custom_call.1} parent=1 // pred_fallthru
      _
    // Predicated region
    $region26: #{tpu_custom_call.1} parent=1 // pred_check
      _
    $region27: #{tpu_custom_call.1} parent=1 // pred_check_branch
      %91 = sbr.rel (0) target = $region29
    $region28: #{tpu_custom_call.1} parent=1 // pred_region
      %s93 = ssub.s32 128, 128
      %94 = vsyncadd [#allocation4], %s93
      %s96 = sshll.u32 [#allocation7], 4
      %s97 = int_to_ptr.vmem [resolvable:$true] %s96
      %99 = dma.vmem_to_hbm [thread:$0]  %s97, 128, %s2, [#allocation4]
    $region29: #{tpu_custom_call.1} parent=1 // pred_fallthru
      _
    // Predicated region
    $region30: #{tpu_custom_call.1} parent=1 // pred_check
      _
    $region31: #{tpu_custom_call.1} parent=1 // pred_check_branch
      %101 = sbr.rel (0) target = $region33
    $region32: #{tpu_custom_call.1} parent=1 // pred_region
      %102 = dma.done [#allocation4], 128
    $region33: #{tpu_custom_call.1} parent=1 // pred_fallthru
      _
    %103 = vsyncpa [#allocation3], 1
    %104 = vsyncpa [#allocation6], 1
    %105 = vsyncpa [#allocation4], 1

</llo_original>
